<compile_context>
chip_gen: v7x
topology: tpu7x:2x2x1
jax: 0.10.0
libtpu: 0.0.40
codegen_flags: <defaults>
</compile_context>

<pallas_src>
import functools

import jax
import jax.numpy as jnp
from jax.experimental import pallas as pl
from jax.experimental.pallas import tpu as pltpu


def _attention_kernel(lengths_ref, dec_ref, enc_ref, w_enc_ref, w_dec_ref,
                      v_ref, out_ref, *, batch_block, t_dec, t_enc, e_dim,
                      tanh_dtype):
    """One grid step processes `batch_block` batches.

    lengths_ref : SMEM [B]               int32 valid encoder lengths (scalar prefetch)
    dec_ref     : VMEM [bb*T_dec, E]     decoder outputs (batch folded into rows)
    enc_ref     : VMEM [bb*T_enc, 2E]    encoder outputs (batch folded into rows)
    w_enc_ref   : VMEM [2E, E]           fc_encoder.weight^T
    w_dec_ref   : VMEM [E, E]            fc_decoder.weight^T
    v_ref       : VMEM [1, E]            v.weight
    out_ref     : VMEM [bb, T_dec, T_enc]
    """
    # Bias-free linear projections: single MXU matmuls with the batch folded
    # into the M dimension (instead of `bb` tiny per-batch matmuls).
    e1 = jnp.dot(enc_ref[...], w_enc_ref[...],
                 preferred_element_type=jnp.float32)             # [bb*T_enc, E]
    e2 = jnp.dot(dec_ref[...], w_dec_ref[...],
                 preferred_element_type=jnp.float32)             # [bb*T_dec, E]
    if tanh_dtype != jnp.float32:
        # bf16 add + tanh on v6e/v7x (bf16 VPU/EUP); f32 accumulation below.
        e1 = e1.astype(tanh_dtype)
        e2 = e2.astype(tanh_dtype)

    # Hoisted out of the batch loop: JAX does not CSE broadcast_in_dim / iota,
    # so emitting them per unrolled iteration would duplicate the work.
    v_b = jnp.broadcast_to(v_ref[...][None], (t_dec, t_enc, e_dim))  # f32
    col = jax.lax.broadcasted_iota(jnp.int32, (t_dec, t_enc), 1)
    base = pl.program_id(0) * batch_block

    # Static unroll over the batches in this block (batch_block is small and
    # static); everything lives inside one grid step, so there is no per-batch
    # pipeline-bubble cost.
    for b in range(batch_block):
        e1_b = e1[b * t_enc:(b + 1) * t_enc, :]                  # [T_enc, E]
        e2_b = e2[b * t_dec:(b + 1) * t_dec, :]                  # [T_dec, E]

        # Additive attention energy: tanh(e1[s] + e2[t]) for every (t, s) pair.
        energy = jnp.tanh(e1_b[None, :, :] + e2_b[:, None, :])   # [T_dec, T_enc, E]

        # v-projection (nn.Linear(E, 1, bias=False)), accumulated in f32 on the
        # VPU (multiply) + XLU (lane reduce).  At production sizes this becomes
        # an MXU matmul: energy.reshape(-1, E) @ v^T.
        scores = jnp.sum(energy.astype(jnp.float32) * v_b, axis=-1)  # [T_dec, T_enc]

        # Padding mask rebuilt from the prefetched length.  -inf matches
        # torch.masked_fill(-inf) + softmax exactly (a fully-masked row produces
        # NaN in PyTorch too); use a large finite fill instead if that must not
        # happen.
        length = lengths_ref[base + b]
        scores = jnp.where(col >= length, -jnp.inf, scores)

        # Numerically-stable softmax over the encoder axis.
        m = jnp.max(scores, axis=-1, keepdims=True)
        p = jnp.exp(scores - m)
        denom = jnp.sum(p, axis=-1, keepdims=True)
        out_ref[b] = (p * pl.reciprocal(denom, approx=True)).astype(out_ref.dtype)


def attention_pallas(decoder_outputs, encoder_outputs, lengths,
                     w_enc_t, w_dec_t, v_row, *, batch_block=None,
                     tanh_dtype=None):
    B, T_dec, E = decoder_outputs.shape
    B2, T_enc, E2 = encoder_outputs.shape
    assert B == B2 and E2 == w_enc_t.shape[0] and E == w_dec_t.shape[0]
    assert v_row.shape == (1, E)

    if batch_block is None:
        # Fold the whole (tiny) batch into one grid step.  For large B on v7x,
        # pick batch_block = B // 2 (or tile T_dec) so both TensorCores get work.
        batch_block = B
    assert B % batch_block == 0

    if tanh_dtype is None:
        kind = jax.devices()[0].device_kind.lower()
        bf16_ok = ("v6" in kind) or ("v7" in kind) or ("7x" in kind)
        tanh_dtype = jnp.bfloat16 if bf16_ok else jnp.float32

    # Wrapper-side layout plumbing (free): fold batch into the matmul M dim.
    dec2d = decoder_outputs.reshape(B * T_dec, E)
    enc2d = encoder_outputs.reshape(B * T_enc, E2)

    kernel = functools.partial(_attention_kernel, batch_block=batch_block,
                               t_dec=T_dec, t_enc=T_enc, e_dim=E,
                               tanh_dtype=tanh_dtype)

    return pl.pallas_call(
        kernel,
        out_shape=jax.ShapeDtypeStruct((B, T_dec, T_enc), jnp.float32),
        grid_spec=pltpu.PrefetchScalarGridSpec(
            num_scalar_prefetch=1,                         # lengths -> SMEM
            grid=(B // batch_block,),
            in_specs=[
                pl.BlockSpec((batch_block * T_dec, E), lambda i, L: (i, 0)),
                pl.BlockSpec((batch_block * T_enc, E2), lambda i, L: (i, 0)),
                pl.BlockSpec((E2, E), lambda i, L: (0, 0)),
                pl.BlockSpec((E, E), lambda i, L: (0, 0)),
                pl.BlockSpec((1, E), lambda i, L: (0, 0)),
            ],
            out_specs=pl.BlockSpec((batch_block, T_dec, T_enc),
                                   lambda i, L: (i, 0, 0)),
        ),
        compiler_params=pltpu.CompilerParams(
            dimension_semantics=("parallel",)),
    )(lengths, dec2d, enc2d, w_enc_t, w_dec_t, v_row)


def attention_reference(decoder_outputs, encoder_outputs, lengths,
                        w_enc_t, w_dec_t, v_row):
    """Pure-JAX f32 reference matching the PyTorch module (padding mask from lengths)."""
    T_enc = encoder_outputs.shape[1]
    e1 = encoder_outputs @ w_enc_t                               # [B, T_enc, E]
    e2 = decoder_outputs @ w_dec_t                               # [B, T_dec, E]
    energy = jnp.tanh(e1[:, None, :, :] + e2[:, :, None, :])     # [B, T_dec, T_enc, E]
    scores = jnp.sum(energy * v_row[0], axis=-1)                 # [B, T_dec, T_enc]
    mask = jnp.arange(T_enc, dtype=jnp.int32)[None, :] >= lengths[:, None]
    scores = jnp.where(mask[:, None, :], -jnp.inf, scores)
    return jax.nn.softmax(scores, axis=-1)


if __name__ == "__main__":
    # Small, deterministic problem: batch=2, embedding_dim=32, T_dec=8, T_enc=16.
    B, E, T_dec, T_enc = 2, 32, 8, 16

    key = jax.random.PRNGKey(0)
    k_dec, k_enc, k_we, k_wd, k_v = jax.random.split(key, 5)

    decoder_outputs = jax.random.normal(k_dec, (B, T_dec, E), dtype=jnp.float32)
    encoder_outputs = jax.random.normal(k_enc, (B, T_enc, 2 * E), dtype=jnp.float32)

    # Parameters stored pre-transposed for x @ W^T (shapes from nn.Linear).
    w_enc_t = 0.1 * jax.random.normal(k_we, (2 * E, E), dtype=jnp.float32)  # fc_encoder.weight^T
    w_dec_t = 0.1 * jax.random.normal(k_wd, (E, E), dtype=jnp.float32)      # fc_decoder.weight^T
    v_row = 0.1 * jax.random.normal(k_v, (1, E), dtype=jnp.float32)         # v.weight (1, E)

    # Padding: batch 0 uses all 16 encoder positions, batch 1 the first 10.
    lengths = jnp.array([T_enc, 10], dtype=jnp.int32)

    kind = jax.devices()[0].device_kind.lower()
    use_bf16 = ("v6" in kind) or ("v7" in kind) or ("7x" in kind)
    tanh_dtype = jnp.bfloat16 if use_bf16 else jnp.float32

    out = attention_pallas(decoder_outputs, encoder_outputs, lengths,
                           w_enc_t, w_dec_t, v_row, tanh_dtype=tanh_dtype)
    out = jax.block_until_ready(out)

    ref = attention_reference(decoder_outputs, encoder_outputs, lengths,
                              w_enc_t, w_dec_t, v_row)

    # Tolerance accounts for the bf16 tanh path (v6e/v7x) and the approximate
    # EUP reciprocal in the softmax epilogue.
    tol = 1e-2 if tanh_dtype == jnp.bfloat16 else 5e-3
    assert out.shape == (B, T_dec, T_enc)
    assert jnp.allclose(out, ref, atol=tol), "mismatch vs pure-JAX reference"
    # Rows must sum to 1 and masked columns must be exactly 0.
    assert jnp.allclose(jnp.sum(out, axis=-1), 1.0, atol=5e-3)
    assert jnp.all(out[1, :, 10:] == 0.0)

    print("KERNEL_OK")
</pallas_src>

<mosaic_0001>
module attributes {stable_mosaic.version = 11 : i64} {
  func.func @_attention_kernel(%arg0: i32, %arg1: memref<2xi32, #tpu.memory_space<smem>>, %arg2: memref<16x32xf32, #tpu.memory_space<vmem>>, %arg3: memref<32x64xf32, #tpu.memory_space<vmem>>, %arg4: memref<64x32xf32, #tpu.memory_space<vmem>>, %arg5: memref<32x32xf32, #tpu.memory_space<vmem>>, %arg6: memref<1x32xf32, #tpu.memory_space<vmem>>, %arg7: memref<2x8x16xf32, #tpu.memory_space<vmem>>) attributes {dimension_semantics = [#tpu.dimension_semantics<parallel>], iteration_bounds = array<i64: 1>, scalar_prefetch = 1 : i64, scratch_operands = 0 : i64, tpu.core_type = #tpu.core_type<tc>, window_params = [{transform_indices = @transform_0, window_bounds = array<i64: 16, 32>}, {transform_indices = @transform_1, window_bounds = array<i64: 32, 64>}, {pipeline_mode = #tpu.pipeline_mode<synchronous>, transform_indices = @transform_2, window_bounds = array<i64: 64, 32>}, {pipeline_mode = #tpu.pipeline_mode<synchronous>, transform_indices = @transform_3, window_bounds = array<i64: 32, 32>}, {pipeline_mode = #tpu.pipeline_mode<synchronous>, transform_indices = @transform_4, window_bounds = array<i64: 1, 32>}, {transform_indices = @transform_5, window_bounds = array<i64: 2, 8, 16>}]} {
    %c0 = arith.constant 0 : index
    %c0_0 = arith.constant 0 : index
    %0 = vector.load %arg3[%c0, %c0_0] : memref<32x64xf32, #tpu.memory_space<vmem>>, vector<32x64xf32>
    %c0_1 = arith.constant 0 : index
    %c0_2 = arith.constant 0 : index
    %1 = vector.load %arg4[%c0_1, %c0_2] : memref<64x32xf32, #tpu.memory_space<vmem>>, vector<64x32xf32>
    %cst = arith.constant dense<0.000000e+00> : vector<32x32xf32>
    %2 = tpu.matmul %0, %1, %cst {dimension_numbers = #tpu.dot_dimension_numbers<[1], [0], [0], [1], [0, 0, 1, 1], [], []>} : vector<32x64xf32>, vector<64x32xf32>, vector<32x32xf32> -> vector<32x32xf32>
    %c0_3 = arith.constant 0 : index
    %c0_4 = arith.constant 0 : index
    %3 = vector.load %arg2[%c0_3, %c0_4] : memref<16x32xf32, #tpu.memory_space<vmem>>, vector<16x32xf32>
    %c0_5 = arith.constant 0 : index
    %c0_6 = arith.constant 0 : index
    %4 = vector.load %arg5[%c0_5, %c0_6] : memref<32x32xf32, #tpu.memory_space<vmem>>, vector<32x32xf32>
    %cst_7 = arith.constant dense<0.000000e+00> : vector<16x32xf32>
    %5 = tpu.matmul %3, %4, %cst_7 {dimension_numbers = #tpu.dot_dimension_numbers<[1], [0], [0], [1], [0, 0, 1, 1], [], []>} : vector<16x32xf32>, vector<32x32xf32>, vector<16x32xf32> -> vector<16x32xf32>
    %c0_8 = arith.constant 0 : index
    %c0_9 = arith.constant 0 : index
    %6 = vector.load %arg6[%c0_8, %c0_9] : memref<1x32xf32, #tpu.memory_space<vmem>>, vector<1x32xf32>
    %7 = vector.shape_cast %6 : vector<1x32xf32> to vector<1x1x32xf32>
    %8 = vector.shape_cast %7 : vector<1x1x32xf32> to vector<1x1x32xf32>
    %9 = vector.broadcast %8 : vector<1x1x32xf32> to vector<8x16x32xf32>
    %10 = tpu.iota {dimensions = array<i32: 1>} : vector<8x16xi32>
    %c2_i32 = arith.constant 2 : i32
    %11 = arith.muli %arg0, %c2_i32 : i32
    %12 = vector.extract_strided_slice %2 {offsets = [0, 0], sizes = [16, 32], strides = [1, 1]} : vector<32x32xf32> to vector<16x32xf32>
    %13 = vector.extract_strided_slice %5 {offsets = [0, 0], sizes = [8, 32], strides = [1, 1]} : vector<16x32xf32> to vector<8x32xf32>
    %14 = vector.shape_cast %12 : vector<16x32xf32> to vector<1x16x32xf32>
    %15 = vector.shape_cast %13 : vector<8x32xf32> to vector<8x1x32xf32>
    %16 = vector.broadcast %14 : vector<1x16x32xf32> to vector<8x16x32xf32>
    %17 = vector.broadcast %15 : vector<8x1x32xf32> to vector<8x16x32xf32>
    %18 = arith.addf %16, %17 : vector<8x16x32xf32>
    %19 = math.tanh %18 : vector<8x16x32xf32>
    %20 = arith.mulf %19, %9 : vector<8x16x32xf32>
    %cst_10 = arith.constant dense<0.000000e+00> : vector<8x16xf32>
    %21 = vector.multi_reduction <add>, %20, %cst_10 [2] : vector<8x16x32xf32> to vector<8x16xf32>
    %c0_i32 = arith.constant 0 : i32
    %22 = arith.addi %11, %c0_i32 : i32
    %23 = arith.index_cast %22 : i32 to index
    %24 = memref.load %arg1[%23] : memref<2xi32, #tpu.memory_space<smem>>
    %25 = vector.broadcast %24 : i32 to vector<8x16xi32>
    %26 = arith.cmpi sge, %10, %25 : vector<8x16xi32>
    %cst_11 = arith.constant 0xFF800000 : f32
    %27 = vector.broadcast %cst_11 : f32 to vector<8x16xf32>
    %28 = arith.select %26, %27, %21 : vector<8x16xi1>, vector<8x16xf32>
    %cst_12 = arith.constant dense<0xFF800000> : vector<8xf32>
    %29 = vector.multi_reduction <maximumf>, %28, %cst_12 [1] : vector<8x16xf32> to vector<8xf32>
    %30 = vector.shape_cast %29 : vector<8xf32> to vector<8x1xf32>
    %31 = vector.broadcast %30 : vector<8x1xf32> to vector<8x16xf32>
    %32 = arith.subf %28, %31 : vector<8x16xf32>
    %33 = math.exp %32 : vector<8x16xf32>
    %cst_13 = arith.constant dense<0.000000e+00> : vector<8xf32>
    %34 = vector.multi_reduction <add>, %33, %cst_13 [1] : vector<8x16xf32> to vector<8xf32>
    %35 = vector.shape_cast %34 : vector<8xf32> to vector<8x1xf32>
    %36 = tpu.reciprocal %35 {approx = true} : vector<8x1xf32> -> vector<8x1xf32>
    %37 = vector.broadcast %36 : vector<8x1xf32> to vector<8x16xf32>
    %38 = arith.mulf %33, %37 : vector<8x16xf32>
    %c0_14 = arith.constant 0 : index
    %c0_15 = arith.constant 0 : index
    %c0_16 = arith.constant 0 : index
    %39 = vector.load %arg7[%c0_14, %c0_15, %c0_16] : memref<2x8x16xf32, #tpu.memory_space<vmem>>, vector<1x8x16xf32>
    %40 = vector.shape_cast %39 : vector<1x8x16xf32> to vector<8x16xf32>
    %41 = vector.shape_cast %38 : vector<8x16xf32> to vector<1x8x16xf32>
    tpu.vector_store %arg7[%c0_14, %c0_15, %c0_16], %41 {strides = array<i32>} : memref<2x8x16xf32, #tpu.memory_space<vmem>>, vector<1x8x16xf32>,
    %42 = vector.extract_strided_slice %2 {offsets = [16, 0], sizes = [16, 32], strides = [1, 1]} : vector<32x32xf32> to vector<16x32xf32>
    %43 = vector.extract_strided_slice %5 {offsets = [8, 0], sizes = [8, 32], strides = [1, 1]} : vector<16x32xf32> to vector<8x32xf32>
    %44 = vector.shape_cast %42 : vector<16x32xf32> to vector<1x16x32xf32>
    %45 = vector.shape_cast %43 : vector<8x32xf32> to vector<8x1x32xf32>
    %46 = vector.broadcast %44 : vector<1x16x32xf32> to vector<8x16x32xf32>
    %47 = vector.broadcast %45 : vector<8x1x32xf32> to vector<8x16x32xf32>
    %48 = arith.addf %46, %47 : vector<8x16x32xf32>
    %49 = math.tanh %48 : vector<8x16x32xf32>
    %50 = arith.mulf %49, %9 : vector<8x16x32xf32>
    %cst_17 = arith.constant dense<0.000000e+00> : vector<8x16xf32>
    %51 = vector.multi_reduction <add>, %50, %cst_17 [2] : vector<8x16x32xf32> to vector<8x16xf32>
    %c1_i32 = arith.constant 1 : i32
    %52 = arith.addi %11, %c1_i32 : i32
    %53 = arith.index_cast %52 : i32 to index
    %54 = memref.load %arg1[%53] : memref<2xi32, #tpu.memory_space<smem>>
    %55 = vector.broadcast %54 : i32 to vector<8x16xi32>
    %56 = arith.cmpi sge, %10, %55 : vector<8x16xi32>
    %cst_18 = arith.constant 0xFF800000 : f32
    %57 = vector.broadcast %cst_18 : f32 to vector<8x16xf32>
    %58 = arith.select %56, %57, %51 : vector<8x16xi1>, vector<8x16xf32>
    %cst_19 = arith.constant dense<0xFF800000> : vector<8xf32>
    %59 = vector.multi_reduction <maximumf>, %58, %cst_19 [1] : vector<8x16xf32> to vector<8xf32>
    %60 = vector.shape_cast %59 : vector<8xf32> to vector<8x1xf32>
    %61 = vector.broadcast %60 : vector<8x1xf32> to vector<8x16xf32>
    %62 = arith.subf %58, %61 : vector<8x16xf32>
    %63 = math.exp %62 : vector<8x16xf32>
    %cst_20 = arith.constant dense<0.000000e+00> : vector<8xf32>
    %64 = vector.multi_reduction <add>, %63, %cst_20 [1] : vector<8x16xf32> to vector<8xf32>
    %65 = vector.shape_cast %64 : vector<8xf32> to vector<8x1xf32>
    %66 = tpu.reciprocal %65 {approx = true} : vector<8x1xf32> -> vector<8x1xf32>
    %67 = vector.broadcast %66 : vector<8x1xf32> to vector<8x16xf32>
    %68 = arith.mulf %63, %67 : vector<8x16xf32>
    %c1 = arith.constant 1 : index
    %c0_21 = arith.constant 0 : index
    %c0_22 = arith.constant 0 : index
    %69 = vector.load %arg7[%c1, %c0_21, %c0_22] : memref<2x8x16xf32, #tpu.memory_space<vmem>>, vector<1x8x16xf32>
    %70 = vector.shape_cast %69 : vector<1x8x16xf32> to vector<8x16xf32>
    %71 = vector.shape_cast %68 : vector<8x16xf32> to vector<1x8x16xf32>
    tpu.vector_store %arg7[%c1, %c0_21, %c0_22], %71 {strides = array<i32>} : memref<2x8x16xf32, #tpu.memory_space<vmem>>, vector<1x8x16xf32>,
    return
  }
  func.func @transform_0(%arg0: i32, %arg1: memref<2xi32, #tpu.memory_space<smem>>) -> (i32, i32) {
    %c0_i32 = arith.constant 0 : i32
    %c0_i32_0 = arith.constant 0 : i32
    return %arg0, %c0_i32 : i32, i32
  }
  func.func @transform_1(%arg0: i32, %arg1: memref<2xi32, #tpu.memory_space<smem>>) -> (i32, i32) {
    %c0_i32 = arith.constant 0 : i32
    %c0_i32_0 = arith.constant 0 : i32
    return %arg0, %c0_i32 : i32, i32
  }
  func.func @transform_2(%arg0: i32, %arg1: memref<2xi32, #tpu.memory_space<smem>>) -> (i32, i32) {
    %c0_i32 = arith.constant 0 : i32
    %c0_i32_0 = arith.constant 0 : i32
    %c0_i32_1 = arith.constant 0 : i32
    return %c0_i32, %c0_i32_0 : i32, i32
  }
  func.func @transform_3(%arg0: i32, %arg1: memref<2xi32, #tpu.memory_space<smem>>) -> (i32, i32) {
    %c0_i32 = arith.constant 0 : i32
    %c0_i32_0 = arith.constant 0 : i32
    %c0_i32_1 = arith.constant 0 : i32
    return %c0_i32, %c0_i32_0 : i32, i32
  }
  func.func @transform_4(%arg0: i32, %arg1: memref<2xi32, #tpu.memory_space<smem>>) -> (i32, i32) {
    %c0_i32 = arith.constant 0 : i32
    %c0_i32_0 = arith.constant 0 : i32
    %c0_i32_1 = arith.constant 0 : i32
    return %c0_i32, %c0_i32_0 : i32, i32
  }
  func.func @transform_5(%arg0: i32, %arg1: memref<2xi32, #tpu.memory_space<smem>>) -> (i32, i32, i32) {
    %c0_i32 = arith.constant 0 : i32
    %c0_i32_0 = arith.constant 0 : i32
    %c0_i32_1 = arith.constant 0 : i32
    return %arg0, %c0_i32, %c0_i32_0 : i32, i32, i32
  }
}

</mosaic_0001>

<llo_original>
// kernel: tpu_custom_call.1
$region0: #{tpu_custom_call.1}
  #allocation0 [shape = 'u32[]', space=smem, size = 0x4, offset = 0x4, fixed_abs, tag = 'smem constant byte address 0x4 - core index']
  #allocation1 [shape = 'u32[144,128]{1,0:T(1,128)}', space=vmem, size = 0x12000, scoped, tag = 'internal scratch']
  #allocation2 [shape = 's32[1]{0}', space=sflag, size = 0x4, scoped, tag = 'scoped memory for tpu_custom_call.1']
  #allocation3 [shape = 'u8[512]{0}', space=smem, size = 0x200, scoped, tag = 'prefetched SMEM operand 0']
  %s0 = inlined_call_operand.vmem [shape: s32[2], index: 0, kind: input, shape index: {}]
  %s1 = inlined_call_operand.vmem [shape: f32[16,32], index: 1, kind: input, shape index: {}]
  %s2 = inlined_call_operand.vmem [shape: f32[32,64], index: 2, kind: input, shape index: {}]
  %s3 = inlined_call_operand.vmem [shape: f32[64,32], index: 3, kind: input, shape index: {}]
  %s4 = inlined_call_operand.vmem [shape: f32[32,32], index: 4, kind: input, shape index: {}]
  %s5 = inlined_call_operand.vmem [shape: f32[1,32], index: 5, kind: input, shape index: {}]
  %s6 = inlined_call_operand.hbm [shape: f32[2,8,16], index: 6, kind: output, shape index: {}]
  %s7 = sld [smem:[#allocation0]]
  $region30: #{tpu_custom_call.1} parent=0
    _
  %s9 = ssub.s32 1, %s7
  %s10 = scalar_select 0, %s9, %s7
  %s11 = sshll.u32 %s0, 4
  %s12 = int_to_ptr.vmem [resolvable:$true] %s11
  %14 = dma.vmem_to_smem %s12, 16, [#allocation3], [#allocation2]
  %15 = dma.done [#allocation2], 16
  %16 = sfence
  $region1: #{tpu_custom_call.1} parent=0
    #allocation4 [shape = 'u8[8192]{0}', space=vmem, size = 0x2000, scoped, tag = 'output window, operand 0, single buffered']
    #allocation5 [shape = 's32[1]{0}', space=sflag, size = 0x4, scoped, tag = 'scoped memory for tpu_custom_call.1']
    %17 = vsyncpa [#allocation5], 0
    // Predicated region
    $region2: #{tpu_custom_call.1} parent=1 // pred_check
      _
    $region3: #{tpu_custom_call.1} parent=1 // pred_check_branch
      %19 = sbr.rel (0) target = $region5
    $region4: #{tpu_custom_call.1} parent=1 // pred_region
      _
    $region5: #{tpu_custom_call.1} parent=1 // pred_fallthru
      _
    // Predicated region
    $region6: #{tpu_custom_call.1} parent=1 // pred_check
      _
    $region7: #{tpu_custom_call.1} parent=1 // pred_check_branch
      %21 = sbr.rel (0) target = $region9
    $region8: #{tpu_custom_call.1} parent=1 // pred_region
      _
    $region9: #{tpu_custom_call.1} parent=1 // pred_fallthru
      _
    // Predicated region
    $region10: #{tpu_custom_call.1} parent=1 // pred_check
      _
    $region11: #{tpu_custom_call.1} parent=1 // pred_check_branch
      %23 = sbr.rel (0) target = $region13
    $region12: #{tpu_custom_call.1} parent=1 // pred_region
      _
    $region13: #{tpu_custom_call.1} parent=1 // pred_fallthru
      _
    // Predicated region
    $region14: #{tpu_custom_call.1} parent=1 // pred_check
      _
    $region15: #{tpu_custom_call.1} parent=1 // pred_check_branch
      %25 = sbr.rel (0) target = $region17
    $region16: #{tpu_custom_call.1} parent=1 // pred_region
      _
    $region17: #{tpu_custom_call.1} parent=1 // pred_fallthru
      _
    // Predicated region
    $region18: #{tpu_custom_call.1} parent=1 // pred_check
      _
    $region19: #{tpu_custom_call.1} parent=1 // pred_check_branch
      %27 = sbr.rel (0) target = $region21
    $region20: #{tpu_custom_call.1} parent=1 // pred_region
      _
    $region21: #{tpu_custom_call.1} parent=1 // pred_fallthru
      _
    %v28 = vld [vmem:[%s2] sm:$0xff]
    %v29 = vld [vmem:[%s2 + $0x8] sm:$0xff]
    %v30 = vld [vmem:[%s2 + $0x10] sm:$0xff]
    %v31 = vld [vmem:[%s2 + $0x18] sm:$0xff]
    %v32 = vld [vmem:[%s3] sm:$0xff]
    %v33 = vld [vmem:[%s3 + $0x8] sm:$0xff]
    %v34 = vld [vmem:[%s3 + $0x10] sm:$0xff]
    %v35 = vld [vmem:[%s3 + $0x18] sm:$0xff]
    %v36 = vld [vmem:[%s3 + $0x20] sm:$0xff]
    %v37 = vld [vmem:[%s3 + $0x28] sm:$0xff]
    %v38 = vld [vmem:[%s3 + $0x30] sm:$0xff]
    %v39 = vld [vmem:[%s3 + $0x38] sm:$0xff]
    %vm40 = vcmask 523264
    %v42 = vsel %vm40, %v28, 0
    %v45 = vsel %vm40, %v29, 0
    %v48 = vsel %vm40, %v30, 0
    %v51 = vsel %vm40, %v31, 0
    %53 = vmatprep.subr.mxu0 0.0
    %54 = vmatpush1.msra.mxu0 %v32
    %55 = vmatprep.subr.mxu0 0.0
    %56 = vmatpush1.msra.mxu0 %v33
    %57 = vmatprep.subr.mxu0 0.0
    %58 = vmatpush1.msra.mxu0 %v34
    %59 = vmatprep.subr.mxu0 0.0
    %60 = vmatpush1.msra.mxu0 %v35
    %61 = vmatprep.subr.mxu0 0.0
    %62 = vmatpush1.msra.mxu0 %v36
    %63 = vmatprep.subr.mxu0 0.0
    %64 = vmatpush1.msra.mxu0 %v37
    %65 = vmatprep.subr.mxu0 0.0
    %66 = vmatpush1.msra.mxu0 %v38
    %67 = vmatprep.subr.mxu0 0.0
    %68 = vmatpush1.msra.mxu0 %v39
    %69 = vmatprep.subr.mxu0 0.0
    %70 = vmatpush1.msra.mxu0 0.0
    %71 = vmatprep.subr.mxu0 0.0
    %72 = vmatpush1.msra.mxu0 0.0
    %73 = vmatprep.subr.mxu0 0.0
    %74 = vmatpush1.msra.mxu0 0.0
    %75 = vmatprep.subr.mxu0 0.0
    %76 = vmatpush1.msra.mxu0 0.0
    %77 = vmatprep.subr.mxu0 0.0
    %78 = vmatpush1.msra.mxu0 0.0
    %79 = vmatprep.subr.mxu0 0.0
    %80 = vmatpush1.msra.mxu0 0.0
    %81 = vmatprep.subr.mxu0 0.0
    %82 = vmatpush1.msra.mxu0 0.0
    %83 = vmatprep.subr.mxu0 0.0
    %84 = vmatpush1.msra.mxu0 0.0
    %85 = vmatprep.subr.mxu0 0.0
    %86 = vmatpush1.msra.mxu0 0.0
    %87 = vmatprep.subr.mxu0 0.0
    %88 = vmatpush1.msra.mxu0 0.0
    %89 = vmatprep.subr.mxu0 0.0
    %90 = vmatpush1.msra.mxu0 0.0
    %91 = vmatprep.subr.mxu0 0.0
    %92 = vmatpush1.msra.mxu0 0.0
    %93 = vmatprep.subr.mxu0 0.0
    %94 = vmatpush1.msra.mxu0 0.0
    %95 = vmatprep.subr.mxu0 0.0
    %96 = vmatpush1.msra.mxu0 0.0
    %97 = vmatprep.subr.mxu0 0.0
    %98 = vmatpush1.msra.mxu0 0.0
    %99 = vmatprep.subr.mxu0 0.0
    %100 = vmatpush1.msra.mxu0 0.0
    %101 = vmatprep.subr.mxu0 0.0
    %102 = vmatpush1.msra.mxu0 0.0
    %103 = vmatprep.subr.mxu0 0.0
    %104 = vmatpush1.msra.mxu0 0.0
    %105 = vmatprep.subr.mxu0 0.0
    %106 = vmatpush1.msra.mxu0 0.0
    %107 = vmatprep.subr.mxu0 0.0
    %108 = vmatpush1.msra.mxu0 0.0
    %109 = vmatprep.subr.mxu0 0.0
    %110 = vmatpush1.msra.mxu0 0.0
    %111 = vmatprep.subr.mxu0 0.0
    %112 = vmatpush1.msra.mxu0 0.0
    %113 = vmatprep.subr.mxu0 0.0
    %114 = vmatpush1.msra.mxu0 0.0
    %115 = vmatprep.subr.mxu0 0.0
    %116 = vmatpush1.msra.mxu0 0.0
    %117 = vmatprep.mubr.f32.mxu0 0.0
    %118 = vmatmul.mubr.f32.gmra.mrb[0].mxu0 %v42
    %v119 = vpop.f32.mrb[0].mxu0
    %v120 = vadd.f32 0.0, %v119
    %v121 = vpop.f32.mrb[0].mxu0
    %122 = vmatprep.mubr.f32.mxu0 0.0
    %123 = vmatmul.mubr.f32.gmra.mrb[0].mxu0 %v45
    %v124 = vpop.f32.mrb[0].mxu0
    %v125 = vadd.f32 0.0, %v124
    %v126 = vpop.f32.mrb[0].mxu0
    %127 = vmatprep.mubr.f32.mxu0 0.0
    %128 = vmatmul.mubr.f32.gmra.mrb[0].mxu0 %v48
    %v129 = vpop.f32.mrb[0].mxu0
    %v130 = vadd.f32 0.0, %v129
    %v131 = vpop.f32.mrb[0].mxu0
    %132 = vmatprep.mubr.f32.mxu0 0.0
    %133 = vmatmul.mubr.f32.gmra.mrb[0].mxu0 %v51
    %v134 = vpop.f32.mrb[0].mxu0
    %v135 = vadd.f32 0.0, %v134
    %v136 = vpop.f32.mrb[0].mxu0
    %137 = vdwg.mxu0
    %v138 = vld [vmem:[%s1] sm:$0xff]
    %v139 = vld [vmem:[%s1 + $0x8] sm:$0xff]
    %v140 = vld [vmem:[%s4] sm:$0xff]
    %v141 = vld [vmem:[%s4 + $0x8] sm:$0xff]
    %v142 = vld [vmem:[%s4 + $0x10] sm:$0xff]
    %v143 = vld [vmem:[%s4 + $0x18] sm:$0xff]
    %vm144 = vcmask 261120
    %v146 = vsel %vm144, %v138, 0
    %v149 = vsel %vm144, %v139, 0
    %151 = vmatprep.subr.mxu0 0.0
    %152 = vmatpush1.msra.mxu0 %v140
    %153 = vmatprep.subr.mxu0 0.0
    %154 = vmatpush1.msra.mxu0 %v141
    %155 = vmatprep.subr.mxu0 0.0
    %156 = vmatpush1.msra.mxu0 %v142
    %157 = vmatprep.subr.mxu0 0.0
    %158 = vmatpush1.msra.mxu0 %v143
    %159 = vmatprep.subr.mxu0 0.0
    %160 = vmatpush1.msra.mxu0 0.0
    %161 = vmatprep.subr.mxu0 0.0
    %162 = vmatpush1.msra.mxu0 0.0
    %163 = vmatprep.subr.mxu0 0.0
    %164 = vmatpush1.msra.mxu0 0.0
    %165 = vmatprep.subr.mxu0 0.0
    %166 = vmatpush1.msra.mxu0 0.0
    %167 = vmatprep.subr.mxu0 0.0
    %168 = vmatpush1.msra.mxu0 0.0
    %169 = vmatprep.subr.mxu0 0.0
    %170 = vmatpush1.msra.mxu0 0.0
    %171 = vmatprep.subr.mxu0 0.0
    %172 = vmatpush1.msra.mxu0 0.0
    %173 = vmatprep.subr.mxu0 0.0
    %174 = vmatpush1.msra.mxu0 0.0
    %175 = vmatprep.subr.mxu0 0.0
    %176 = vmatpush1.msra.mxu0 0.0
    %177 = vmatprep.subr.mxu0 0.0
    %178 = vmatpush1.msra.mxu0 0.0
    %179 = vmatprep.subr.mxu0 0.0
    %180 = vmatpush1.msra.mxu0 0.0
    %181 = vmatprep.subr.mxu0 0.0
    %182 = vmatpush1.msra.mxu0 0.0
    %183 = vmatprep.subr.mxu0 0.0
    %184 = vmatpush1.msra.mxu0 0.0
    %185 = vmatprep.subr.mxu0 0.0
    %186 = vmatpush1.msra.mxu0 0.0
    %187 = vmatprep.subr.mxu0 0.0
    %188 = vmatpush1.msra.mxu0 0.0
    %189 = vmatprep.subr.mxu0 0.0
    %190 = vmatpush1.msra.mxu0 0.0
    %191 = vmatprep.subr.mxu0 0.0
    %192 = vmatpush1.msra.mxu0 0.0
    %193 = vmatprep.subr.mxu0 0.0
    %194 = vmatpush1.msra.mxu0 0.0
    %195 = vmatprep.subr.mxu0 0.0
    %196 = vmatpush1.msra.mxu0 0.0
    %197 = vmatprep.subr.mxu0 0.0
    %198 = vmatpush1.msra.mxu0 0.0
    %199 = vmatprep.subr.mxu0 0.0
    %200 = vmatpush1.msra.mxu0 0.0
    %201 = vmatprep.subr.mxu0 0.0
    %202 = vmatpush1.msra.mxu0 0.0
    %203 = vmatprep.subr.mxu0 0.0
    %204 = vmatpush1.msra.mxu0 0.0
    %205 = vmatprep.subr.mxu0 0.0
    %206 = vmatpush1.msra.mxu0 0.0
    %207 = vmatprep.subr.mxu0 0.0
    %208 = vmatpush1.msra.mxu0 0.0
    %209 = vmatprep.subr.mxu0 0.0
    %210 = vmatpush1.msra.mxu0 0.0
    %211 = vmatprep.subr.mxu0 0.0
    %212 = vmatpush1.msra.mxu0 0.0
    %213 = vmatprep.subr.mxu0 0.0
    %214 = vmatpush1.msra.mxu0 0.0
    %215 = vmatprep.mubr.f32.mxu0 0.0
    %216 = vmatmul.mubr.f32.gmra.mrb[0].mxu0 %v146
    %v217 = vpop.f32.mrb[0].mxu0
    %v218 = vadd.f32 0.0, %v217
    %v219 = vpop.f32.mrb[0].mxu0
    %220 = vmatprep.mubr.f32.mxu0 0.0
    %221 = vmatmul.mubr.f32.gmra.mrb[0].mxu0 %v149
    %v222 = vpop.f32.mrb[0].mxu0
    %v223 = vadd.f32 0.0, %v222
    %v224 = vpop.f32.mrb[0].mxu0
    %225 = vdwg.mxu0
    %v226 = vld [vmem:[%s5] sm:$0x1]
    %v228 = vlaneseq
    %v229 = vshrl.u32 %v228, 7
    %v230 = vsub.s32 0, %v229
    %v231 = vrot.slane %v226, %v230
    %v233 = vlaneseq
    %v234 = vand.u32 %v233, 127
    %s235 = smul.u32 0, 2
    %v237 = vcombine.high %v218, %v218
    %v239 = vunpack.c.l.s4 1966171168
    %v240 = vunpack.c.0.s8 %v239
    %v241 = vlaneseq
    %v242 = vshrl.u32 %v241, 7
    %v243 = vsub.s32 %v240, %v242
    %v244 = vrot.slane %v218, %v243
    %v246 = vunpack.c.l.s4 1966171168
    %v247 = vunpack.c.0.s8 %v246
    %v248 = vlaneseq
    %v249 = vshrl.u32 %v248, 7
    %v250 = vsub.s32 %v247, %v249
    %v251 = vrot.slane %v237, %v250
    %v252 = vcombine.high %v244, %v244
    %v253 = vcombine.high %v251, %v251
    %v255 = vunpack.c.l.s4 1966171168
    %v256 = vunpack.c.0.s8 %v255
    %v257 = vlaneseq
    %v258 = vshrl.u32 %v257, 7
    %v259 = vsub.s32 %v256, %v258
    %v260 = vrot.slane %v244, %v259
    %v262 = vunpack.c.l.s4 1966171168
    %v263 = vunpack.c.0.s8 %v262
    %v264 = vlaneseq
    %v265 = vshrl.u32 %v264, 7
    %v266 = vsub.s32 %v263, %v265
    %v267 = vrot.slane %v251, %v266
    %v269 = vunpack.c.l.s4 1966171168
    %v270 = vunpack.c.0.s8 %v269
    %v271 = vlaneseq
    %v272 = vshrl.u32 %v271, 7
    %v273 = vsub.s32 %v270, %v272
    %v274 = vrot.slane %v252, %v273
    %v276 = vunpack.c.l.s4 1966171168
    %v277 = vunpack.c.0.s8 %v276
    %v278 = vlaneseq
    %v279 = vshrl.u32 %v278, 7
    %v280 = vsub.s32 %v277, %v279
    %v281 = vrot.slane %v253, %v280
    %v282 = vcombine.high %v260, %v260
    %v283 = vcombine.high %v267, %v267
    %v284 = vcombine.high %v274, %v274
    %v285 = vcombine.high %v281, %v281
    %v286 = vlaneseq
    %v287 = vshrl.u32 %v286, 7
    %v288 = vsub.s32 0, %v287
    %v289 = vrot.slane %v260, %v288
    %v290 = vlaneseq
    %v291 = vshrl.u32 %v290, 7
    %v292 = vsub.s32 0, %v291
    %v293 = vrot.slane %v274, %v292
    %v294 = vlaneseq
    %v295 = vshrl.u32 %v294, 7
    %v296 = vsub.s32 0, %v295
    %v297 = vrot.slane %v282, %v296
    %v298 = vlaneseq
    %v299 = vshrl.u32 %v298, 7
    %v300 = vsub.s32 0, %v299
    %v301 = vrot.slane %v284, %v300
    %v302 = vlaneseq
    %v303 = vshrl.u32 %v302, 7
    %v304 = vsub.s32 0, %v303
    %v305 = vrot.slane %v267, %v304
    %v306 = vlaneseq
    %v307 = vshrl.u32 %v306, 7
    %v308 = vsub.s32 0, %v307
    %v309 = vrot.slane %v281, %v308
    %v310 = vlaneseq
    %v311 = vshrl.u32 %v310, 7
    %v312 = vsub.s32 0, %v311
    %v313 = vrot.slane %v283, %v312
    %v314 = vlaneseq
    %v315 = vshrl.u32 %v314, 7
    %v316 = vsub.s32 0, %v315
    %v317 = vrot.slane %v285, %v316
    %v326 = vadd.f32 %v120, %v289
    %v327 = vadd.f32 %v125, %v289
    %v328 = vadd.f32 %v120, %v293
    %v329 = vadd.f32 %v125, %v293
    %v330 = vadd.f32 %v120, %v297
    %v331 = vadd.f32 %v125, %v297
    %v332 = vadd.f32 %v120, %v301
    %v333 = vadd.f32 %v125, %v301
    %v334 = vadd.f32 %v120, %v305
    %v335 = vadd.f32 %v125, %v305
    %v336 = vadd.f32 %v120, %v309
    %v337 = vadd.f32 %v125, %v309
    %v338 = vadd.f32 %v120, %v313
    %v339 = vadd.f32 %v125, %v313
    %v340 = vadd.f32 %v120, %v317
    %v341 = vadd.f32 %v125, %v317
    %v342 = vtanh.pop %v326
    %v343 = vtanh.pop %v327
    %v344 = vtanh.pop %v328
    %v345 = vtanh.pop %v329
    %v346 = vtanh.pop %v330
    %v347 = vtanh.pop %v331
    %v348 = vtanh.pop %v332
    %v349 = vtanh.pop %v333
    %v350 = vtanh.pop %v334
    %v351 = vtanh.pop %v335
    %v352 = vtanh.pop %v336
    %v353 = vtanh.pop %v337
    %v354 = vtanh.pop %v338
    %v355 = vtanh.pop %v339
    %v356 = vtanh.pop %v340
    %v357 = vtanh.pop %v341
    %v358 = vmul.f32 %v342, %v231
    %v359 = vmul.f32 %v343, %v231
    %v360 = vmul.f32 %v344, %v231
    %v361 = vmul.f32 %v345, %v231
    %v362 = vmul.f32 %v346, %v231
    %v363 = vmul.f32 %v347, %v231
    %v364 = vmul.f32 %v348, %v231
    %v365 = vmul.f32 %v349, %v231
    %v366 = vmul.f32 %v350, %v231
    %v367 = vmul.f32 %v351, %v231
    %v368 = vmul.f32 %v352, %v231
    %v369 = vmul.f32 %v353, %v231
    %v370 = vmul.f32 %v354, %v231
    %v371 = vmul.f32 %v355, %v231
    %v372 = vmul.f32 %v356, %v231
    %v373 = vmul.f32 %v357, %v231
    %v374 = vsel %vm144, %v358, 0.0
    %375 = vadd.xlane.f32.xlu0 %v374
    %v376 = vpop.xlane.xlu0 %375
    %v377 = vsel %vm144, %v359, 0.0
    %378 = vadd.xlane.f32.xlu0 %v377
    %v379 = vpop.xlane.xlu0 %378
    %v380 = vsel %vm144, %v360, 0.0
    %381 = vadd.xlane.f32.xlu0 %v380
    %v382 = vpop.xlane.xlu0 %381
    %v383 = vsel %vm144, %v361, 0.0
    %384 = vadd.xlane.f32.xlu0 %v383
    %v385 = vpop.xlane.xlu0 %384
    %v386 = vsel %vm144, %v362, 0.0
    %387 = vadd.xlane.f32.xlu0 %v386
    %v388 = vpop.xlane.xlu0 %387
    %v389 = vsel %vm144, %v363, 0.0
    %390 = vadd.xlane.f32.xlu0 %v389
    %v391 = vpop.xlane.xlu0 %390
    %v392 = vsel %vm144, %v364, 0.0
    %393 = vadd.xlane.f32.xlu0 %v392
    %v394 = vpop.xlane.xlu0 %393
    %v395 = vsel %vm144, %v365, 0.0
    %396 = vadd.xlane.f32.xlu0 %v395
    %v397 = vpop.xlane.xlu0 %396
    %v398 = vsel %vm144, %v366, 0.0
    %399 = vadd.xlane.f32.xlu0 %v398
    %v400 = vpop.xlane.xlu0 %399
    %v401 = vsel %vm144, %v367, 0.0
    %402 = vadd.xlane.f32.xlu0 %v401
    %v403 = vpop.xlane.xlu0 %402
    %v404 = vsel %vm144, %v368, 0.0
    %405 = vadd.xlane.f32.xlu0 %v404
    %v406 = vpop.xlane.xlu0 %405
    %v407 = vsel %vm144, %v369, 0.0
    %408 = vadd.xlane.f32.xlu0 %v407
    %v409 = vpop.xlane.xlu0 %408
    %v410 = vsel %vm144, %v370, 0.0
    %411 = vadd.xlane.f32.xlu0 %v410
    %v412 = vpop.xlane.xlu0 %411
    %v413 = vsel %vm144, %v371, 0.0
    %414 = vadd.xlane.f32.xlu0 %v413
    %v415 = vpop.xlane.xlu0 %414
    %v416 = vsel %vm144, %v372, 0.0
    %417 = vadd.xlane.f32.xlu0 %v416
    %v418 = vpop.xlane.xlu0 %417
    %v419 = vsel %vm144, %v373, 0.0
    %420 = vadd.xlane.f32.xlu0 %v419
    %v421 = vpop.xlane.xlu0 %420
    %s422 = sld [smem:[#allocation3 + %s235]]
    %v423 = vstv %s422
    %vm424 = vcmp.ge.s32.totalorder %v234, %v423
    %v441 = vlaneseq
    %v442 = vshrl.u32 %v441, 7
    %v443 = vsub.s32 %v234, %v442
    %v444 = vrot.slane %v376, %v443
    %v445 = vadd.s32 %v234, 4294967288
    %v446 = vlaneseq
    %v447 = vshrl.u32 %v446, 7
    %v448 = vsub.s32 %v445, %v447
    %v449 = vrot.slane %v379, %v448
    %vm450 = vcmask 130112
    %v451 = vsel %vm450, %v449, %v444
    %v452 = vlaneseq
    %v453 = vshrl.u32 %v452, 7
    %v454 = vsub.s32 %v234, %v453
    %v455 = vrot.slane %v382, %v454
    %v456 = vlaneseq
    %v457 = vshrl.u32 %v456, 7
    %v458 = vsub.s32 %v445, %v457
    %v459 = vrot.slane %v385, %v458
    %v460 = vsel %vm450, %v459, %v455
    %v461 = vlaneseq
    %v462 = vshrl.u32 %v461, 7
    %v463 = vsub.s32 %v234, %v462
    %v464 = vrot.slane %v388, %v463
    %v465 = vlaneseq
    %v466 = vshrl.u32 %v465, 7
    %v467 = vsub.s32 %v445, %v466
    %v468 = vrot.slane %v391, %v467
    %v469 = vsel %vm450, %v468, %v464
    %v470 = vlaneseq
    %v471 = vshrl.u32 %v470, 7
    %v472 = vsub.s32 %v234, %v471
    %v473 = vrot.slane %v394, %v472
    %v474 = vlaneseq
    %v475 = vshrl.u32 %v474, 7
    %v476 = vsub.s32 %v445, %v475
    %v477 = vrot.slane %v397, %v476
    %v478 = vsel %vm450, %v477, %v473
    %v479 = vlaneseq
    %v480 = vshrl.u32 %v479, 7
    %v481 = vsub.s32 %v234, %v480
    %v482 = vrot.slane %v400, %v481
    %v483 = vlaneseq
    %v484 = vshrl.u32 %v483, 7
    %v485 = vsub.s32 %v445, %v484
    %v486 = vrot.slane %v403, %v485
    %v487 = vsel %vm450, %v486, %v482
    %v488 = vlaneseq
    %v489 = vshrl.u32 %v488, 7
    %v490 = vsub.s32 %v234, %v489
    %v491 = vrot.slane %v406, %v490
    %v492 = vlaneseq
    %v493 = vshrl.u32 %v492, 7
    %v494 = vsub.s32 %v445, %v493
    %v495 = vrot.slane %v409, %v494
    %v496 = vsel %vm450, %v495, %v491
    %v497 = vlaneseq
    %v498 = vshrl.u32 %v497, 7
    %v499 = vsub.s32 %v234, %v498
    %v500 = vrot.slane %v412, %v499
    %v501 = vlaneseq
    %v502 = vshrl.u32 %v501, 7
    %v503 = vsub.s32 %v445, %v502
    %v504 = vrot.slane %v415, %v503
    %v505 = vsel %vm450, %v504, %v500
    %v506 = vlaneseq
    %v507 = vshrl.u32 %v506, 7
    %v508 = vsub.s32 %v234, %v507
    %v509 = vrot.slane %v418, %v508
    %v510 = vlaneseq
    %v511 = vshrl.u32 %v510, 7
    %v512 = vsub.s32 %v445, %v511
    %v513 = vrot.slane %v421, %v512
    %v514 = vsel %vm450, %v513, %v509
    %vm515 = vcmask 1041409
    %v516 = vsel %vm515, %v460, %v451
    %vm517 = vcmask 1042434
    %v518 = vsel %vm517, %v469, %v516
    %vm519 = vcmask 1043459
    %v520 = vsel %vm519, %v478, %v518
    %vm521 = vcmask 1044484
    %v522 = vsel %vm521, %v487, %v520
    %vm523 = vcmask 1045509
    %v524 = vsel %vm523, %v496, %v522
    %vm525 = vcmask 1046534
    %v526 = vsel %vm525, %v505, %v524
    %vm527 = vcmask 1047559
    %v528 = vsel %vm527, %v514, %v526
    %v530 = vsel %vm424, -inf, %v528
    %vm531 = vcmask 130048
    %v532 = vsel %vm531, %v530, -inf
    %533 = vmax.xlane.f32.xlu0 %v532
    %v534 = vpop.xlane.xlu0 %533
    %v535 = vsub.f32 %v530, %v534
    %v536 = vmul.f32 %v535, 1.442695
    %v537 = vpow.pop %v536
    %v538 = vsel %vm531, %v537, 0.0
    %539 = vadd.xlane.f32.xlu0 %v538
    %v540 = vpop.xlane.xlu0 %539
    %v541 = vrcp.pop %v540
    %v542 = vmul.f32 %v537, %v541
    %543 = vst.msk [vmem:[#allocation4] sm:$0xff] %vm531, %v542
    %v545 = vcombine.high %v223, %v223
    %v547 = vunpack.c.l.s4 1966171168
    %v548 = vunpack.c.0.s8 %v547
    %v549 = vlaneseq
    %v550 = vshrl.u32 %v549, 7
    %v551 = vsub.s32 %v548, %v550
    %v552 = vrot.slane %v223, %v551
    %v554 = vunpack.c.l.s4 1966171168
    %v555 = vunpack.c.0.s8 %v554
    %v556 = vlaneseq
    %v557 = vshrl.u32 %v556, 7
    %v558 = vsub.s32 %v555, %v557
    %v559 = vrot.slane %v545, %v558
    %v560 = vcombine.high %v552, %v552
    %v561 = vcombine.high %v559, %v559
    %v563 = vunpack.c.l.s4 1966171168
    %v564 = vunpack.c.0.s8 %v563
    %v565 = vlaneseq
    %v566 = vshrl.u32 %v565, 7
    %v567 = vsub.s32 %v564, %v566
    %v568 = vrot.slane %v552, %v567
    %v570 = vunpack.c.l.s4 1966171168
    %v571 = vunpack.c.0.s8 %v570
    %v572 = vlaneseq
    %v573 = vshrl.u32 %v572, 7
    %v574 = vsub.s32 %v571, %v573
    %v575 = vrot.slane %v559, %v574
    %v577 = vunpack.c.l.s4 1966171168
    %v578 = vunpack.c.0.s8 %v577
    %v579 = vlaneseq
    %v580 = vshrl.u32 %v579, 7
    %v581 = vsub.s32 %v578, %v580
    %v582 = vrot.slane %v560, %v581
    %v584 = vunpack.c.l.s4 1966171168
    %v585 = vunpack.c.0.s8 %v584
    %v586 = vlaneseq
    %v587 = vshrl.u32 %v586, 7
    %v588 = vsub.s32 %v585, %v587
    %v589 = vrot.slane %v561, %v588
    %v590 = vcombine.high %v568, %v568
    %v591 = vcombine.high %v575, %v575
    %v592 = vcombine.high %v582, %v582
    %v593 = vcombine.high %v589, %v589
    %v594 = vlaneseq
    %v595 = vshrl.u32 %v594, 7
    %v596 = vsub.s32 0, %v595
    %v597 = vrot.slane %v568, %v596
    %v598 = vlaneseq
    %v599 = vshrl.u32 %v598, 7
    %v600 = vsub.s32 0, %v599
    %v601 = vrot.slane %v582, %v600
    %v602 = vlaneseq
    %v603 = vshrl.u32 %v602, 7
    %v604 = vsub.s32 0, %v603
    %v605 = vrot.slane %v590, %v604
    %v606 = vlaneseq
    %v607 = vshrl.u32 %v606, 7
    %v608 = vsub.s32 0, %v607
    %v609 = vrot.slane %v592, %v608
    %v610 = vlaneseq
    %v611 = vshrl.u32 %v610, 7
    %v612 = vsub.s32 0, %v611
    %v613 = vrot.slane %v575, %v612
    %v614 = vlaneseq
    %v615 = vshrl.u32 %v614, 7
    %v616 = vsub.s32 0, %v615
    %v617 = vrot.slane %v589, %v616
    %v618 = vlaneseq
    %v619 = vshrl.u32 %v618, 7
    %v620 = vsub.s32 0, %v619
    %v621 = vrot.slane %v591, %v620
    %v622 = vlaneseq
    %v623 = vshrl.u32 %v622, 7
    %v624 = vsub.s32 0, %v623
    %v625 = vrot.slane %v593, %v624
    %v634 = vadd.f32 %v130, %v597
    %v635 = vadd.f32 %v135, %v597
    %v636 = vadd.f32 %v130, %v601
    %v637 = vadd.f32 %v135, %v601
    %v638 = vadd.f32 %v130, %v605
    %v639 = vadd.f32 %v135, %v605
    %v640 = vadd.f32 %v130, %v609
    %v641 = vadd.f32 %v135, %v609
    %v642 = vadd.f32 %v130, %v613
    %v643 = vadd.f32 %v135, %v613
    %v644 = vadd.f32 %v130, %v617
    %v645 = vadd.f32 %v135, %v617
    %v646 = vadd.f32 %v130, %v621
    %v647 = vadd.f32 %v135, %v621
    %v648 = vadd.f32 %v130, %v625
    %v649 = vadd.f32 %v135, %v625
    %v650 = vtanh.pop %v634
    %v651 = vtanh.pop %v635
    %v652 = vtanh.pop %v636
    %v653 = vtanh.pop %v637
    %v654 = vtanh.pop %v638
    %v655 = vtanh.pop %v639
    %v656 = vtanh.pop %v640
    %v657 = vtanh.pop %v641
    %v658 = vtanh.pop %v642
    %v659 = vtanh.pop %v643
    %v660 = vtanh.pop %v644
    %v661 = vtanh.pop %v645
    %v662 = vtanh.pop %v646
    %v663 = vtanh.pop %v647
    %v664 = vtanh.pop %v648
    %v665 = vtanh.pop %v649
    %v666 = vmul.f32 %v650, %v231
    %v667 = vmul.f32 %v651, %v231
    %v668 = vmul.f32 %v652, %v231
    %v669 = vmul.f32 %v653, %v231
    %v670 = vmul.f32 %v654, %v231
    %v671 = vmul.f32 %v655, %v231
    %v672 = vmul.f32 %v656, %v231
    %v673 = vmul.f32 %v657, %v231
    %v674 = vmul.f32 %v658, %v231
    %v675 = vmul.f32 %v659, %v231
    %v676 = vmul.f32 %v660, %v231
    %v677 = vmul.f32 %v661, %v231
    %v678 = vmul.f32 %v662, %v231
    %v679 = vmul.f32 %v663, %v231
    %v680 = vmul.f32 %v664, %v231
    %v681 = vmul.f32 %v665, %v231
    %v682 = vsel %vm144, %v666, 0.0
    %683 = vadd.xlane.f32.xlu0 %v682
    %v684 = vpop.xlane.xlu0 %683
    %v685 = vsel %vm144, %v667, 0.0
    %686 = vadd.xlane.f32.xlu0 %v685
    %v687 = vpop.xlane.xlu0 %686
    %v688 = vsel %vm144, %v668, 0.0
    %689 = vadd.xlane.f32.xlu0 %v688
    %v690 = vpop.xlane.xlu0 %689
    %v691 = vsel %vm144, %v669, 0.0
    %692 = vadd.xlane.f32.xlu0 %v691
    %v693 = vpop.xlane.xlu0 %692
    %v694 = vsel %vm144, %v670, 0.0
    %695 = vadd.xlane.f32.xlu0 %v694
    %v696 = vpop.xlane.xlu0 %695
    %v697 = vsel %vm144, %v671, 0.0
    %698 = vadd.xlane.f32.xlu0 %v697
    %v699 = vpop.xlane.xlu0 %698
    %v700 = vsel %vm144, %v672, 0.0
    %701 = vadd.xlane.f32.xlu0 %v700
    %v702 = vpop.xlane.xlu0 %701
    %v703 = vsel %vm144, %v673, 0.0
    %704 = vadd.xlane.f32.xlu0 %v703
    %v705 = vpop.xlane.xlu0 %704
    %v706 = vsel %vm144, %v674, 0.0
    %707 = vadd.xlane.f32.xlu0 %v706
    %v708 = vpop.xlane.xlu0 %707
    %v709 = vsel %vm144, %v675, 0.0
    %710 = vadd.xlane.f32.xlu0 %v709
    %v711 = vpop.xlane.xlu0 %710
    %v712 = vsel %vm144, %v676, 0.0
    %713 = vadd.xlane.f32.xlu0 %v712
    %v714 = vpop.xlane.xlu0 %713
    %v715 = vsel %vm144, %v677, 0.0
    %716 = vadd.xlane.f32.xlu0 %v715
    %v717 = vpop.xlane.xlu0 %716
    %v718 = vsel %vm144, %v678, 0.0
    %719 = vadd.xlane.f32.xlu0 %v718
    %v720 = vpop.xlane.xlu0 %719
    %v721 = vsel %vm144, %v679, 0.0
    %722 = vadd.xlane.f32.xlu0 %v721
    %v723 = vpop.xlane.xlu0 %722
    %v724 = vsel %vm144, %v680, 0.0
    %725 = vadd.xlane.f32.xlu0 %v724
    %v726 = vpop.xlane.xlu0 %725
    %v727 = vsel %vm144, %v681, 0.0
    %728 = vadd.xlane.f32.xlu0 %v727
    %v729 = vpop.xlane.xlu0 %728
    %s730 = sadd.s32 %s235, 1
    %s731 = sld [smem:[#allocation3 + %s730]]
    %v732 = vstv %s731
    %vm733 = vcmp.ge.s32.totalorder %v234, %v732
    %v750 = vlaneseq
    %v751 = vshrl.u32 %v750, 7
    %v752 = vsub.s32 %v234, %v751
    %v753 = vrot.slane %v684, %v752
    %v754 = vlaneseq
    %v755 = vshrl.u32 %v754, 7
    %v756 = vsub.s32 %v445, %v755
    %v757 = vrot.slane %v687, %v756
    %v758 = vsel %vm450, %v757, %v753
    %v759 = vlaneseq
    %v760 = vshrl.u32 %v759, 7
    %v761 = vsub.s32 %v234, %v760
    %v762 = vrot.slane %v690, %v761
    %v763 = vlaneseq
    %v764 = vshrl.u32 %v763, 7
    %v765 = vsub.s32 %v445, %v764
    %v766 = vrot.slane %v693, %v765
    %v767 = vsel %vm450, %v766, %v762
    %v768 = vlaneseq
    %v769 = vshrl.u32 %v768, 7
    %v770 = vsub.s32 %v234, %v769
    %v771 = vrot.slane %v696, %v770
    %v772 = vlaneseq
    %v773 = vshrl.u32 %v772, 7
    %v774 = vsub.s32 %v445, %v773
    %v775 = vrot.slane %v699, %v774
    %v776 = vsel %vm450, %v775, %v771
    %v777 = vlaneseq
    %v778 = vshrl.u32 %v777, 7
    %v779 = vsub.s32 %v234, %v778
    %v780 = vrot.slane %v702, %v779
    %v781 = vlaneseq
    %v782 = vshrl.u32 %v781, 7
    %v783 = vsub.s32 %v445, %v782
    %v784 = vrot.slane %v705, %v783
    %v785 = vsel %vm450, %v784, %v780
    %v786 = vlaneseq
    %v787 = vshrl.u32 %v786, 7
    %v788 = vsub.s32 %v234, %v787
    %v789 = vrot.slane %v708, %v788
    %v790 = vlaneseq
    %v791 = vshrl.u32 %v790, 7
    %v792 = vsub.s32 %v445, %v791
    %v793 = vrot.slane %v711, %v792
    %v794 = vsel %vm450, %v793, %v789
    %v795 = vlaneseq
    %v796 = vshrl.u32 %v795, 7
    %v797 = vsub.s32 %v234, %v796
    %v798 = vrot.slane %v714, %v797
    %v799 = vlaneseq
    %v800 = vshrl.u32 %v799, 7
    %v801 = vsub.s32 %v445, %v800
    %v802 = vrot.slane %v717, %v801
    %v803 = vsel %vm450, %v802, %v798
    %v804 = vlaneseq
    %v805 = vshrl.u32 %v804, 7
    %v806 = vsub.s32 %v234, %v805
    %v807 = vrot.slane %v720, %v806
    %v808 = vlaneseq
    %v809 = vshrl.u32 %v808, 7
    %v810 = vsub.s32 %v445, %v809
    %v811 = vrot.slane %v723, %v810
    %v812 = vsel %vm450, %v811, %v807
    %v813 = vlaneseq
    %v814 = vshrl.u32 %v813, 7
    %v815 = vsub.s32 %v234, %v814
    %v816 = vrot.slane %v726, %v815
    %v817 = vlaneseq
    %v818 = vshrl.u32 %v817, 7
    %v819 = vsub.s32 %v445, %v818
    %v820 = vrot.slane %v729, %v819
    %v821 = vsel %vm450, %v820, %v816
    %v822 = vsel %vm515, %v767, %v758
    %v823 = vsel %vm517, %v776, %v822
    %v824 = vsel %vm519, %v785, %v823
    %v825 = vsel %vm521, %v794, %v824
    %v826 = vsel %vm523, %v803, %v825
    %v827 = vsel %vm525, %v812, %v826
    %v828 = vsel %vm527, %v821, %v827
    %v830 = vsel %vm733, -inf, %v828
    %v831 = vsel %vm531, %v830, -inf
    %832 = vmax.xlane.f32.xlu0 %v831
    %v833 = vpop.xlane.xlu0 %832
    %v834 = vsub.f32 %v830, %v833
    %v835 = vmul.f32 %v834, 1.442695
    %v836 = vpow.pop %v835
    %v837 = vsel %vm531, %v836, 0.0
    %838 = vadd.xlane.f32.xlu0 %v837
    %v839 = vpop.xlane.xlu0 %838
    %v840 = vrcp.pop %v839
    %v841 = vmul.f32 %v836, %v840
    %s842 = scalar_lea.vmem [#allocation4], 8
    %843 = vst.msk [vmem:[%s842] sm:$0xff] %vm531, %v841
    // Predicated region
    $region22: #{tpu_custom_call.1} parent=1 // pred_check
      _
    $region23: #{tpu_custom_call.1} parent=1 // pred_check_branch
      %845 = sbr.rel (0) target = $region25
    $region24: #{tpu_custom_call.1} parent=1 // pred_region
      %s847 = ssub.s32 256, 256
      %848 = vsyncadd [#allocation5], %s847
      %s849 = sshll.u32 [#allocation4], 4
      %s850 = int_to_ptr.vmem [resolvable:$true] %s849
      %855 = dma.vmem_to_hbm [thread:$0]  %s850, 256, %s6, [#allocation5], 128, 128, 8
    $region25: #{tpu_custom_call.1} parent=1 // pred_fallthru
      _
    // Predicated region
    $region26: #{tpu_custom_call.1} parent=1 // pred_check
      _
    $region27: #{tpu_custom_call.1} parent=1 // pred_check_branch
      %857 = sbr.rel (0) target = $region29
    $region28: #{tpu_custom_call.1} parent=1 // pred_region
      %858 = dma.done [#allocation5], 256
    $region29: #{tpu_custom_call.1} parent=1 // pred_fallthru
      _
    %859 = vsyncpa [#allocation5], 1

</llo_original>
